<compile_context>
chip_gen: v6e
topology: v6e:2x2x1
jax: 0.10.0
libtpu: 0.0.40
codegen_flags: <defaults>
</compile_context>

<pallas_src>
import functools
import math

import numpy as np
import jax
import jax.numpy as jnp
from jax import lax
from jax.experimental import pallas as pl
from jax.experimental.pallas import tpu as pltpu
from jax.scipy.special import erf as _jax_erf


_INV_SQRT2 = 1.0 / math.sqrt(2.0)
# Exact GELU of the only values a Haar mother wavelet can produce: {-1, 0, +1}.
_GELU_P1 = 0.8413447460685429     # GELU(+1) = 0.5 * (1 + erf(1/sqrt(2)))
_GELU_M1 = -0.15865525393145707   # GELU(-1)


def _round_up(n, m):
    return ((n + m - 1) // m) * m


# ----------------------------------------------------------------------------
# Pallas kernel
# ----------------------------------------------------------------------------
def wavelet_layer_kernel(x_ref, win_ref, bin_ref, wcmb_ref, wpar_ref,
                         bias_ref, opar_ref, out_ref, *, out_true, out_p):
    # One fused input matmul. Columns [0, OUT_P) = direct Linear,
    # [OUT_P, OUT_P+NH_P) = Haar projection. f32 on the MXU: the Haar
    # thresholds at 0 / 0.5 / 1 are compare-sensitive, bf16 could flip them.
    y = jnp.dot(x_ref[...], win_ref[...],
                preferred_element_type=jnp.float32) + bin_ref[...]
    direct = y[:, :out_p]                     # lane-aligned slice (OUT_P % 128 == 0)
    proj = y[:, out_p:]                       # Haar projection columns only

    wpar = wpar_ref[...]                      # [2, NH_P]: 1/scale, translation
    sx = (proj - wpar[1:2, :]) * wpar[0:1, :]

    # Haar output is exactly {-1, 0, +1}; GELU of it is a constant 3-way
    # select folded into the two threshold compares -> zero transcendentals.
    g = (_GELU_P1 * ((sx >= 0.0) & (sx < 0.5)).astype(jnp.float32)
         + _GELU_M1 * ((sx >= 0.5) & (sx < 1.0)).astype(jnp.float32))

    # Combine matmul restricted to the Haar columns (K = NH_P). The Daubechies
    # branch is batch-constant and was folded into bias_ref by the wrapper.
    # TODO(synk): bf16 operands here (g is a 3-level constant, result feeds
    # LayerNorm) once downstream tolerances allow.
    combined = (direct
                + jnp.dot(g, wcmb_ref[...], preferred_element_type=jnp.float32)
                + bias_ref[...])

    # LayerNorm over the TRUE out_features; padded columns of `combined` are
    # exactly zero and are excluded from the variance via the static lane mask.
    opar = opar_ref[...]                      # [3, OUT_P]: gamma, beta, lane mask
    inv_n = 1.0 / out_true
    mu = jnp.sum(combined, axis=-1, keepdims=True) * inv_n
    xc = (combined - mu) * opar[2:3, :]
    var = jnp.sum(xc * xc, axis=-1, keepdims=True) * inv_n
    out_ref[...] = xc * lax.rsqrt(var + 1e-5) * opar[0:1, :] + opar[1:2, :]


# ----------------------------------------------------------------------------
# Host-side packing (one-time) and tiling / VMEM plan
# ----------------------------------------------------------------------------
def pack_params(params, num_haar):
    """Pack layer parameters into lane-aligned, kernel-friendly arrays."""
    w_lin, w_proj, w_comb = params["w_lin"], params["w_proj"], params["w_comb"]
    in_f, out_f = w_lin.shape
    nw = w_proj.shape[1]
    num_db = nw - num_haar

    out_p = _round_up(out_f, 128)
    nh_p = _round_up(max(num_haar, 1), 128)
    cols = out_p + nh_p

    # Fused input weight/bias: [direct (padded) | haar projection (padded)]
    w_in = jnp.zeros((in_f, cols), jnp.float32)
    w_in = w_in.at[:, :out_f].set(w_lin)
    w_in = w_in.at[:, out_p:out_p + num_haar].set(w_proj[:, :num_haar])
    b_in = jnp.zeros((1, cols), jnp.float32)
    b_in = b_in.at[:, :out_f].set(params["b_lin"])
    b_in = b_in.at[:, out_p:out_p + num_haar].set(params["b_proj"][:, :num_haar])

    # Combine weight: Haar rows only (db contribution folds into a per-call bias).
    w_cmb = jnp.zeros((nh_p, out_p), jnp.float32)
    w_cmb = w_cmb.at[:num_haar, :out_f].set(w_comb[:num_haar, :])

    # Per-haar-wavelet params: row0 = 1/scale, row1 = translation.
    # Padded columns: translation = 1e9 so sx is far outside [0, 1) -> g = 0.
    wpar = jnp.zeros((2, nh_p), jnp.float32)
    wpar = wpar.at[0, :].set(1.0)
    wpar = wpar.at[0, :num_haar].set(1.0 / params["scales"][0, :num_haar])
    wpar = wpar.at[1, :].set(1e9)
    wpar = wpar.at[1, :num_haar].set(params["translations"][0, :num_haar])

    # LayerNorm gamma / beta + static lane mask for the true output columns.
    opar = jnp.zeros((3, out_p), jnp.float32)
    opar = opar.at[0, :out_f].set(params["ln_gamma"][0])
    opar = opar.at[1, :out_f].set(params["ln_beta"][0])
    opar = opar.at[2, :out_f].set(1.0)

    return {
        "w_in": w_in, "b_in": b_in, "w_cmb": w_cmb, "wpar": wpar, "opar": opar,
        "out_f": out_f, "out_p": out_p, "nh_p": nh_p, "num_haar": num_haar,
        # Daubechies branch constants (used by the wrapper only):
        "w_proj_db": w_proj[:, num_haar:],
        "b_proj_db": params["b_proj"][:, num_haar:],
        "db_factor": params["db_factor"][0, num_haar:][None, :],
        "w_comb_db": w_comb[num_haar:, :] if num_db > 0
                     else jnp.zeros((0, out_f), jnp.float32),
        "b_comb": params["b_comb"],
    }


def _plan_tiles(B, tile_b, in_f, out_p, resident_bytes, budget=44 << 20):
    """Pick a batch tile that fits a v7x-safe VMEM budget, with balanced tiles
    (minimal zero-row padding) and >=2 grid tiles for megacore when B allows."""
    tile_bytes = lambda t: 2 * 4 * t * (in_f + out_p)   # double-buffered x/out
    tb = max(8, _round_up(tile_b, 8))
    while tb > 8 and resident_bytes + tile_bytes(tb) > budget:
        tb = max(8, _round_up(tb // 2, 8))
    n_tiles = max(1, -(-B // tb))
    if n_tiles == 1 and B >= 16:
        n_tiles = 2                      # let v7x's two TensorCores each take a tile
    tb = _round_up(-(-B // n_tiles), 8)
    b_pad = tb * n_tiles
    vmem_limit = int(min(96 << 20,
                         max(32 << 20, resident_bytes + tile_bytes(tb) + (8 << 20))))
    return tb, n_tiles, b_pad, vmem_limit


def wavelet_layer_forward(x, packed, *, tile_b=512):
    B, in_f = x.shape
    out_f, out_p, nh_p = packed["out_f"], packed["out_p"], packed["nh_p"]
    cols = out_p + nh_p

    # ---- Daubechies branch: batch-constant, folded into a [1, OUT_P] bias ----
    if packed["w_proj_db"].shape[1] > 0:
        xm = jnp.mean(x[: min(4, B)], axis=0, keepdims=True)        # [1, IN]
        db_val = xm @ packed["w_proj_db"] + packed["b_proj_db"]     # [1, NDB]
        db_out = db_val * packed["db_factor"]
        db_gelu = 0.5 * db_out * (1.0 + _jax_erf(db_out * _INV_SQRT2))  # exact GELU
        bias = packed["b_comb"] + db_gelu @ packed["w_comb_db"]     # [1, OUT]
    else:
        bias = packed["b_comb"]
    bias_row = jnp.zeros((1, out_p), jnp.float32).at[:, :out_f].set(bias)

    # Resident weights counted double-buffered (conservative).
    resident = 2 * 4 * (in_f * cols + nh_p * out_p + cols + 2 * nh_p + 4 * out_p)
    tb, n_tiles, b_pad, vmem_limit = _plan_tiles(B, tile_b, in_f, out_p, resident)
    # TODO(synk): if resident weights alone exceed the budget (huge feature
    # dims on v7x / 64 MiB VMEM), add a grid axis over OUT_P+NH_P with an f32
    # accumulator scratch instead of keeping the weights fully resident.

    x_in = x if b_pad == B else jnp.pad(x, ((0, b_pad - B), (0, 0)))

    const = lambda i: (0, 0)
    flops = int(2 * b_pad * in_f * cols + 2 * b_pad * nh_p * out_p
                + 10 * b_pad * nh_p + 8 * b_pad * out_p)
    bytes_accessed = int(4 * (b_pad * (in_f + out_p) + in_f * cols + cols
                              + nh_p * out_p + 2 * nh_p + 4 * out_p))

    out = pl.pallas_call(
        functools.partial(wavelet_layer_kernel,
                          out_true=float(out_f), out_p=out_p),
        out_shape=jax.ShapeDtypeStruct((b_pad, out_p), jnp.float32),
        grid=(n_tiles,),
        in_specs=[
            pl.BlockSpec((tb, in_f), lambda i: (i, 0)),   # x (batch tiled)
            pl.BlockSpec((in_f, cols), const),            # fused input weight
            pl.BlockSpec((1, cols), const),               # fused input bias
            pl.BlockSpec((nh_p, out_p), const),           # Haar combine weight
            pl.BlockSpec((2, nh_p), const),               # 1/scale, translation
            pl.BlockSpec((1, out_p), const),              # b_comb + db contribution
            pl.BlockSpec((3, out_p), const),              # gamma, beta, lane mask
        ],
        out_specs=pl.BlockSpec((tb, out_p), lambda i: (i, 0)),
        compiler_params=pltpu.CompilerParams(
            dimension_semantics=("parallel",),
            vmem_limit_bytes=vmem_limit),
        cost_estimate=pl.CostEstimate(flops=flops,
                                      transcendentals=int(b_pad),  # one rsqrt/row
                                      bytes_accessed=bytes_accessed),
    )(x_in, packed["w_in"], packed["b_in"], packed["w_cmb"],
      packed["wpar"], bias_row, packed["opar"])
    return out[:B, :out_f]


# ----------------------------------------------------------------------------
# Deterministic parameter construction (mirrors WaveletLayer.__init__ /
# _init_parameters for wavelet_type='mixed', high_frequency=False)
# ----------------------------------------------------------------------------
def build_params(key, in_features, out_features, num_wavelets):
    num_haar = num_wavelets // 3
    num_db2 = num_wavelets // 3
    num_db4 = num_wavelets - (num_haar + num_db2)

    scales = np.concatenate([
        np.logspace(-0.5, 0.5, num_haar),
        np.logspace(-0.3, 0.7, num_db2),
        np.logspace(-0.3, 0.7, num_db4),
    ]).astype(np.float32)
    translations = np.concatenate([
        np.linspace(-1.5, 1.5, num_haar),
        np.linspace(-1.5, 1.5, num_db2),
        np.linspace(-1.5, 1.5, num_db4),
    ]).astype(np.float32)

    DB2_HI = np.array([-0.1294095225512604, -0.2241438680420134,
                       0.8365163037378079, -0.4829629131445341])
    DB4_HI = np.array([-0.0074578275060427, -0.0233534968567756,
                       0.0218081502370024, 0.1323683939878645,
                       -0.0197721859913265, -0.4461007108737368,
                       0.5055922216746659, -0.1629171572809054])

    def db_factor_for(scale, trans, hi, mult, max_shift):
        scale_factor = (1.0 / (1.0 + np.exp(-scale))) * 2.0
        shift = int(np.clip(np.round(trans * mult), 0, max_shift))
        scaled = np.roll(hi, shift) * scale_factor
        fsum = np.abs(scaled).sum()
        feat = np.mean(np.sin(scaled * 5.0))
        if fsum > 0:
            feat = feat / (fsum * 0.1)
        return feat

    db_factor = np.zeros(num_wavelets, dtype=np.float32)
    for j in range(num_db2):
        i = num_haar + j
        db_factor[i] = db_factor_for(scales[i], translations[i], DB2_HI, 4, 3)
    for j in range(num_db4):
        i = num_haar + num_db2 + j
        db_factor[i] = db_factor_for(scales[i], translations[i], DB4_HI, 8, 7)

    # kaiming_normal_(fan_in, 'linear') -> std = 1/sqrt(fan_in); biases = 0
    k1, k2, k3 = jax.random.split(key, 3)
    w_lin = (jax.random.normal(k1, (in_features, out_features), jnp.float32)
             / math.sqrt(in_features))
    w_proj = (jax.random.normal(k2, (in_features, num_wavelets), jnp.float32)
              / math.sqrt(in_features))
    w_comb = (jax.random.normal(k3, (num_wavelets, out_features), jnp.float32)
              / math.sqrt(num_wavelets))

    params = {
        "w_lin": w_lin,
        "b_lin": jnp.zeros((1, out_features), jnp.float32),
        "w_proj": w_proj,
        "b_proj": jnp.zeros((1, num_wavelets), jnp.float32),
        "w_comb": w_comb,
        "b_comb": jnp.zeros((1, out_features), jnp.float32),
        "scales": jnp.asarray(scales)[None, :],
        "translations": jnp.asarray(translations)[None, :],
        "db_factor": jnp.asarray(db_factor)[None, :],
        "ln_gamma": jnp.ones((1, out_features), jnp.float32),
        "ln_beta": jnp.zeros((1, out_features), jnp.float32),
    }
    return params, num_haar


# ----------------------------------------------------------------------------
# Pure-JAX reference (mirrors the PyTorch module math) for the sanity check
# ----------------------------------------------------------------------------
def reference_forward(x, params, *, num_haar):
    B = x.shape[0]
    NW = params["scales"].shape[1]
    direct = x @ params["w_lin"] + params["b_lin"]
    wi = x @ params["w_proj"] + params["b_proj"]
    sx = (wi - params["translations"]) / params["scales"]
    haar = (((sx >= 0.0) & (sx < 0.5)).astype(jnp.float32)
            - ((sx >= 0.5) & (sx < 1.0)).astype(jnp.float32))
    value = jnp.mean(wi[: min(4, B), :], axis=0, keepdims=True)
    db = jnp.broadcast_to(value * params["db_factor"], (B, NW))
    idx = jnp.arange(NW)[None, :]
    wout = jnp.where(idx < num_haar, haar, db)
    g = 0.5 * wout * (1.0 + _jax_erf(wout * _INV_SQRT2))   # exact-erf GELU
    wpath = g @ params["w_comb"] + params["b_comb"]
    comb = direct + wpath
    mu = jnp.mean(comb, axis=-1, keepdims=True)
    var = jnp.mean((comb - mu) ** 2, axis=-1, keepdims=True)
    normed = (comb - mu) * lax.rsqrt(var + 1e-5)
    return normed * params["ln_gamma"] + params["ln_beta"]


if __name__ == "__main__":
    B, IN, OUT, NW = 8, 32, 32, 16

    key = jax.random.PRNGKey(0)
    kx, kp, kx2 = jax.random.split(key, 3)
    x = jax.random.normal(kx, (B, IN), jnp.float32)
    params, num_haar = build_params(kp, IN, OUT, NW)
    packed = pack_params(params, num_haar)

    out = jax.block_until_ready(wavelet_layer_forward(x, packed))
    ref = reference_forward(x, params, num_haar=num_haar)
    np.testing.assert_allclose(np.asarray(out), np.asarray(ref),
                               rtol=5e-3, atol=5e-3)
    assert out.shape == (B, OUT) and np.all(np.isfinite(np.asarray(out)))

    # Multi-tile / padded-batch path (exercises the 2-tile "parallel" grid).
    B2 = 40
    x2 = jax.random.normal(kx2, (B2, IN), jnp.float32)
    out2 = jax.block_until_ready(wavelet_layer_forward(x2, packed))
    ref2 = reference_forward(x2, params, num_haar=num_haar)
    np.testing.assert_allclose(np.asarray(out2), np.asarray(ref2),
                               rtol=5e-3, atol=5e-3)
    assert out2.shape == (B2, OUT) and np.all(np.isfinite(np.asarray(out2)))

    print("KERNEL_OK")
</pallas_src>

<mosaic_0001>
module attributes {stable_mosaic.version = 11 : i64} {
  func.func @wavelet_layer_kernel(%arg0: i32, %arg1: memref<8x32xf32, #tpu.memory_space<vmem>>, %arg2: memref<32x256xf32, #tpu.memory_space<vmem>>, %arg3: memref<1x256xf32, #tpu.memory_space<vmem>>, %arg4: memref<128x128xf32, #tpu.memory_space<vmem>>, %arg5: memref<2x128xf32, #tpu.memory_space<vmem>>, %arg6: memref<1x128xf32, #tpu.memory_space<vmem>>, %arg7: memref<3x128xf32, #tpu.memory_space<vmem>>, %arg8: memref<8x128xf32, #tpu.memory_space<vmem>>) attributes {dimension_semantics = [#tpu.dimension_semantics<parallel>], iteration_bounds = array<i64: 1>, scalar_prefetch = 0 : i64, scratch_operands = 0 : i64, tpu.core_type = #tpu.core_type<tc>, window_params = [{transform_indices = @transform_0, window_bounds = array<i64: 8, 32>}, {pipeline_mode = #tpu.pipeline_mode<synchronous>, transform_indices = @transform_1, window_bounds = array<i64: 32, 256>}, {pipeline_mode = #tpu.pipeline_mode<synchronous>, transform_indices = @transform_2, window_bounds = array<i64: 1, 256>}, {pipeline_mode = #tpu.pipeline_mode<synchronous>, transform_indices = @transform_3, window_bounds = array<i64: 128, 128>}, {pipeline_mode = #tpu.pipeline_mode<synchronous>, transform_indices = @transform_4, window_bounds = array<i64: 2, 128>}, {pipeline_mode = #tpu.pipeline_mode<synchronous>, transform_indices = @transform_5, window_bounds = array<i64: 1, 128>}, {pipeline_mode = #tpu.pipeline_mode<synchronous>, transform_indices = @transform_6, window_bounds = array<i64: 3, 128>}, {transform_indices = @transform_7, window_bounds = array<i64: 8, 128>}]} {
    %c0 = arith.constant 0 : index
    %c0_0 = arith.constant 0 : index
    %0 = vector.load %arg1[%c0, %c0_0] : memref<8x32xf32, #tpu.memory_space<vmem>>, vector<8x32xf32>
    %c0_1 = arith.constant 0 : index
    %c0_2 = arith.constant 0 : index
    %1 = vector.load %arg2[%c0_1, %c0_2] : memref<32x256xf32, #tpu.memory_space<vmem>>, vector<32x256xf32>
    %cst = arith.constant dense<0.000000e+00> : vector<8x256xf32>
    %2 = tpu.matmul %0, %1, %cst {dimension_numbers = #tpu.dot_dimension_numbers<[1], [0], [0], [1], [0, 0, 1, 1], [], []>} : vector<8x32xf32>, vector<32x256xf32>, vector<8x256xf32> -> vector<8x256xf32>
    %c0_3 = arith.constant 0 : index
    %c0_4 = arith.constant 0 : index
    %3 = vector.load %arg3[%c0_3, %c0_4] : memref<1x256xf32, #tpu.memory_space<vmem>>, vector<1x256xf32>
    %4 = vector.broadcast %3 : vector<1x256xf32> to vector<8x256xf32>
    %5 = arith.addf %2, %4 : vector<8x256xf32>
    %6 = vector.extract_strided_slice %5 {offsets = [0, 0], sizes = [8, 128], strides = [1, 1]} : vector<8x256xf32> to vector<8x128xf32>
    %7 = vector.extract_strided_slice %5 {offsets = [0, 128], sizes = [8, 128], strides = [1, 1]} : vector<8x256xf32> to vector<8x128xf32>
    %c0_5 = arith.constant 0 : index
    %c0_6 = arith.constant 0 : index
    %8 = vector.load %arg5[%c0_5, %c0_6] : memref<2x128xf32, #tpu.memory_space<vmem>>, vector<2x128xf32>
    %9 = vector.extract_strided_slice %8 {offsets = [1, 0], sizes = [1, 128], strides = [1, 1]} : vector<2x128xf32> to vector<1x128xf32>
    %10 = vector.broadcast %9 : vector<1x128xf32> to vector<8x128xf32>
    %11 = arith.subf %7, %10 : vector<8x128xf32>
    %12 = vector.extract_strided_slice %8 {offsets = [0, 0], sizes = [1, 128], strides = [1, 1]} : vector<2x128xf32> to vector<1x128xf32>
    %13 = vector.broadcast %12 : vector<1x128xf32> to vector<8x128xf32>
    %14 = arith.mulf %11, %13 : vector<8x128xf32>
    %cst_7 = arith.constant 0.000000e+00 : f32
    %15 = vector.broadcast %cst_7 : f32 to vector<8x128xf32>
    %16 = arith.cmpf oge, %14, %15 : vector<8x128xf32>
    %cst_8 = arith.constant 5.000000e-01 : f32
    %17 = vector.broadcast %cst_8 : f32 to vector<8x128xf32>
    %18 = arith.cmpf olt, %14, %17 : vector<8x128xf32>
    %19 = arith.andi %16, %18 : vector<8x128xi1>
    %20 = arith.extui %19 : vector<8x128xi1> to vector<8x128xi32>
    %21 = arith.sitofp %20 : vector<8x128xi32> to vector<8x128xf32>
    %cst_9 = arith.constant 0.841344773 : f32
    %22 = vector.broadcast %cst_9 : f32 to vector<8x128xf32>
    %23 = arith.mulf %22, %21 : vector<8x128xf32>
    %cst_10 = arith.constant 5.000000e-01 : f32
    %24 = vector.broadcast %cst_10 : f32 to vector<8x128xf32>
    %25 = arith.cmpf oge, %14, %24 : vector<8x128xf32>
    %cst_11 = arith.constant 1.000000e+00 : f32
    %26 = vector.broadcast %cst_11 : f32 to vector<8x128xf32>
    %27 = arith.cmpf olt, %14, %26 : vector<8x128xf32>
    %28 = arith.andi %25, %27 : vector<8x128xi1>
    %29 = arith.extui %28 : vector<8x128xi1> to vector<8x128xi32>
    %30 = arith.sitofp %29 : vector<8x128xi32> to vector<8x128xf32>
    %cst_12 = arith.constant -0.158655256 : f32
    %31 = vector.broadcast %cst_12 : f32 to vector<8x128xf32>
    %32 = arith.mulf %31, %30 : vector<8x128xf32>
    %33 = arith.addf %23, %32 : vector<8x128xf32>
    %c0_13 = arith.constant 0 : index
    %c0_14 = arith.constant 0 : index
    %34 = vector.load %arg4[%c0_13, %c0_14] : memref<128x128xf32, #tpu.memory_space<vmem>>, vector<128x128xf32>
    %cst_15 = arith.constant dense<0.000000e+00> : vector<8x128xf32>
    %35 = tpu.matmul %33, %34, %cst_15 {dimension_numbers = #tpu.dot_dimension_numbers<[1], [0], [0], [1], [0, 0, 1, 1], [], []>} : vector<8x128xf32>, vector<128x128xf32>, vector<8x128xf32> -> vector<8x128xf32>
    %36 = arith.addf %6, %35 : vector<8x128xf32>
    %c0_16 = arith.constant 0 : index
    %c0_17 = arith.constant 0 : index
    %37 = vector.load %arg6[%c0_16, %c0_17] : memref<1x128xf32, #tpu.memory_space<vmem>>, vector<1x128xf32>
    %38 = vector.broadcast %37 : vector<1x128xf32> to vector<8x128xf32>
    %39 = arith.addf %36, %38 : vector<8x128xf32>
    %c0_18 = arith.constant 0 : index
    %c0_19 = arith.constant 0 : index
    %40 = vector.load %arg7[%c0_18, %c0_19] : memref<3x128xf32, #tpu.memory_space<vmem>>, vector<3x128xf32>
    %cst_20 = arith.constant dense<0.000000e+00> : vector<8xf32>
    %41 = vector.multi_reduction <add>, %39, %cst_20 [1] : vector<8x128xf32> to vector<8xf32>
    %42 = vector.shape_cast %41 : vector<8xf32> to vector<8x1xf32>
    %cst_21 = arith.constant 3.125000e-02 : f32
    %43 = vector.broadcast %cst_21 : f32 to vector<8x1xf32>
    %44 = arith.mulf %42, %43 : vector<8x1xf32>
    %45 = vector.broadcast %44 : vector<8x1xf32> to vector<8x128xf32>
    %46 = arith.subf %39, %45 : vector<8x128xf32>
    %47 = vector.extract_strided_slice %40 {offsets = [2, 0], sizes = [1, 128], strides = [1, 1]} : vector<3x128xf32> to vector<1x128xf32>
    %48 = vector.broadcast %47 : vector<1x128xf32> to vector<8x128xf32>
    %49 = arith.mulf %46, %48 : vector<8x128xf32>
    %50 = arith.mulf %49, %49 : vector<8x128xf32>
    %cst_22 = arith.constant dense<0.000000e+00> : vector<8xf32>
    %51 = vector.multi_reduction <add>, %50, %cst_22 [1] : vector<8x128xf32> to vector<8xf32>
    %52 = vector.shape_cast %51 : vector<8xf32> to vector<8x1xf32>
    %cst_23 = arith.constant 3.125000e-02 : f32
    %53 = vector.broadcast %cst_23 : f32 to vector<8x1xf32>
    %54 = arith.mulf %52, %53 : vector<8x1xf32>
    %cst_24 = arith.constant 9.99999974E-6 : f32
    %55 = vector.broadcast %cst_24 : f32 to vector<8x1xf32>
    %56 = arith.addf %54, %55 : vector<8x1xf32>
    %57 = math.rsqrt %56 : vector<8x1xf32>
    %58 = vector.broadcast %57 : vector<8x1xf32> to vector<8x128xf32>
    %59 = arith.mulf %49, %58 : vector<8x128xf32>
    %60 = vector.extract_strided_slice %40 {offsets = [0, 0], sizes = [1, 128], strides = [1, 1]} : vector<3x128xf32> to vector<1x128xf32>
    %61 = vector.broadcast %60 : vector<1x128xf32> to vector<8x128xf32>
    %62 = arith.mulf %59, %61 : vector<8x128xf32>
    %63 = vector.extract_strided_slice %40 {offsets = [1, 0], sizes = [1, 128], strides = [1, 1]} : vector<3x128xf32> to vector<1x128xf32>
    %64 = vector.broadcast %63 : vector<1x128xf32> to vector<8x128xf32>
    %65 = arith.addf %62, %64 : vector<8x128xf32>
    %c0_25 = arith.constant 0 : index
    %c0_26 = arith.constant 0 : index
    %66 = vector.load %arg8[%c0_25, %c0_26] : memref<8x128xf32, #tpu.memory_space<vmem>>, vector<8x128xf32>
    tpu.vector_store %arg8[%c0_25, %c0_26], %65 {strides = array<i32>} : memref<8x128xf32, #tpu.memory_space<vmem>>, vector<8x128xf32>,
    return
  }
  func.func @transform_0(%arg0: i32) -> (i32, i32) {
    %c0_i32 = arith.constant 0 : i32
    %c0_i32_0 = arith.constant 0 : i32
    return %arg0, %c0_i32 : i32, i32
  }
  func.func @transform_1(%arg0: i32) -> (i32, i32) {
    %c0_i32 = arith.constant 0 : i32
    %c0_i32_0 = arith.constant 0 : i32
    %c0_i32_1 = arith.constant 0 : i32
    return %c0_i32, %c0_i32_0 : i32, i32
  }
  func.func @transform_2(%arg0: i32) -> (i32, i32) {
    %c0_i32 = arith.constant 0 : i32
    %c0_i32_0 = arith.constant 0 : i32
    %c0_i32_1 = arith.constant 0 : i32
    return %c0_i32, %c0_i32_0 : i32, i32
  }
  func.func @transform_3(%arg0: i32) -> (i32, i32) {
    %c0_i32 = arith.constant 0 : i32
    %c0_i32_0 = arith.constant 0 : i32
    %c0_i32_1 = arith.constant 0 : i32
    return %c0_i32, %c0_i32_0 : i32, i32
  }
  func.func @transform_4(%arg0: i32) -> (i32, i32) {
    %c0_i32 = arith.constant 0 : i32
    %c0_i32_0 = arith.constant 0 : i32
    %c0_i32_1 = arith.constant 0 : i32
    return %c0_i32, %c0_i32_0 : i32, i32
  }
  func.func @transform_5(%arg0: i32) -> (i32, i32) {
    %c0_i32 = arith.constant 0 : i32
    %c0_i32_0 = arith.constant 0 : i32
    %c0_i32_1 = arith.constant 0 : i32
    return %c0_i32, %c0_i32_0 : i32, i32
  }
  func.func @transform_6(%arg0: i32) -> (i32, i32) {
    %c0_i32 = arith.constant 0 : i32
    %c0_i32_0 = arith.constant 0 : i32
    %c0_i32_1 = arith.constant 0 : i32
    return %c0_i32, %c0_i32_0 : i32, i32
  }
  func.func @transform_7(%arg0: i32) -> (i32, i32) {
    %c0_i32 = arith.constant 0 : i32
    %c0_i32_0 = arith.constant 0 : i32
    return %arg0, %c0_i32 : i32, i32
  }
}

</mosaic_0001>

<llo_original>
// kernel: tpu_custom_call.1
$region0: #{tpu_custom_call.1}
  #allocation0 [shape = 'u32[]', space=smem, size = 0x4, offset = 0x4, fixed_abs, tag = 'smem constant byte address 0x4 - core index']
  #allocation1 [shape = 'u32[144,128]{1,0:T(1,128)}', space=vmem, size = 0x12000, scoped, tag = 'internal scratch']
  %s0 = inlined_call_operand.hbm [shape: f32[8,32], index: 0, kind: input, shape index: {}]
  %s1 = inlined_call_operand.hbm [shape: f32[32,256], index: 1, kind: input, shape index: {}]
  %s2 = inlined_call_operand.vmem [shape: f32[1,256], index: 2, kind: input, shape index: {}]
  %s3 = inlined_call_operand.hbm [shape: f32[128,128], index: 3, kind: input, shape index: {}]
  %s4 = inlined_call_operand.hbm [shape: f32[2,128], index: 4, kind: input, shape index: {}]
  %s5 = inlined_call_operand.vmem [shape: f32[1,128], index: 5, kind: input, shape index: {}]
  %s6 = inlined_call_operand.vmem [shape: f32[3,128], index: 6, kind: input, shape index: {}]
  %s7 = inlined_call_operand.hbm [shape: f32[8,128], index: 7, kind: output, shape index: {}]
  %s8 = sld [smem:[#allocation0]]
  $region54: #{tpu_custom_call.1} parent=0
    _
  %s10 = ssub.s32 1, %s8
  %s11 = scalar_select 0, %s10, %s8
  $region1: #{tpu_custom_call.1} parent=0
    #allocation2 [shape = 'u8[4096]{0}', space=vmem, size = 0x1000, scoped, tag = 'input window, operand 0, single buffered']
    #allocation3 [shape = 's32[1]{0}', space=sflag, size = 0x4, scoped, tag = 'scoped memory for tpu_custom_call.1']
    #allocation4 [shape = 's32[1]{0}', space=sflag, size = 0x4, scoped, tag = 'scoped memory for tpu_custom_call.1']
    #allocation5 [shape = 'u8[32768]{0}', space=vmem, size = 0x8000, scoped, tag = 'input window, operand 1, single buffered']
    #allocation6 [shape = 's32[1]{0}', space=sflag, size = 0x4, scoped, tag = 'scoped memory for tpu_custom_call.1']
    #allocation7 [shape = 'u8[65536]{0}', space=vmem, size = 0x10000, scoped, tag = 'input window, operand 3, single buffered']
    #allocation8 [shape = 'u8[1024]{0}', space=vmem, size = 0x400, scoped, tag = 'input window, operand 4, single buffered']
    #allocation9 [shape = 's32[1]{0}', space=sflag, size = 0x4, scoped, tag = 'scoped memory for tpu_custom_call.1']
    #allocation10 [shape = 'u8[4096]{0}', space=vmem, size = 0x1000, scoped, tag = 'output window, operand 0, single buffered']
    %12 = vsyncpa [#allocation3], 0
    %13 = vsyncpa [#allocation6], 0
    %14 = vsyncpa [#allocation9], 0
    %15 = vsyncpa [#allocation4], 0
    // Predicated region
    $region2: #{tpu_custom_call.1} parent=1 // pred_check
      _
    $region3: #{tpu_custom_call.1} parent=1 // pred_check_branch
      %17 = sbr.rel (0) target = $region5
    $region4: #{tpu_custom_call.1} parent=1 // pred_region
      %s19 = ssub.s32 128, 128
      %20 = vsyncadd [#allocation3], %s19
      %s22 = sshll.u32 [#allocation2], 4
      %s23 = int_to_ptr.vmem [resolvable:$true] %s22
      %25 = dma.hbm_to_vmem [thread:$0]  %s0, 128, %s23, [#allocation3]
    $region5: #{tpu_custom_call.1} parent=1 // pred_fallthru
      _
    // Predicated region
    $region6: #{tpu_custom_call.1} parent=1 // pred_check
      _
    $region7: #{tpu_custom_call.1} parent=1 // pred_check_branch
      %27 = sbr.rel (0) target = $region9
    $region8: #{tpu_custom_call.1} parent=1 // pred_region
      %s29 = ssub.s32 1024, 1024
      %30 = vsyncadd [#allocation6], %s29
      %s31 = sshll.u32 [#allocation5], 4
      %s32 = int_to_ptr.vmem [resolvable:$true] %s31
      %37 = dma.hbm_to_vmem [thread:$0]  %s1, 1024, %s32, [#allocation6], 256, 256, 16
    $region9: #{tpu_custom_call.1} parent=1 // pred_fallthru
      _
    // Predicated region
    $region10: #{tpu_custom_call.1} parent=1 // pred_check
      _
    $region11: #{tpu_custom_call.1} parent=1 // pred_check_branch
      %39 = sbr.rel (0) target = $region13
    $region12: #{tpu_custom_call.1} parent=1 // pred_region
      _
    $region13: #{tpu_custom_call.1} parent=1 // pred_fallthru
      _
    // Predicated region
    $region14: #{tpu_custom_call.1} parent=1 // pred_check
      _
    $region15: #{tpu_custom_call.1} parent=1 // pred_check_branch
      %41 = sbr.rel (0) target = $region17
    $region16: #{tpu_custom_call.1} parent=1 // pred_region
      %s43 = ssub.s32 2048, 2048
      %44 = vsyncadd [#allocation6], %s43
      %s45 = sshll.u32 [#allocation7], 4
      %s46 = int_to_ptr.vmem [resolvable:$true] %s45
      %51 = dma.hbm_to_vmem [thread:$0]  %s3, 2048, %s46, [#allocation6], 128, 128, 8
    $region17: #{tpu_custom_call.1} parent=1 // pred_fallthru
      _
    // Predicated region
    $region18: #{tpu_custom_call.1} parent=1 // pred_check
      _
    $region19: #{tpu_custom_call.1} parent=1 // pred_check_branch
      %53 = sbr.rel (0) target = $region21
    $region20: #{tpu_custom_call.1} parent=1 // pred_region
      %s55 = ssub.s32 32, 32
      %56 = vsyncadd [#allocation9], %s55
      %s58 = sshll.u32 [#allocation8], 4
      %s59 = int_to_ptr.vmem [resolvable:$true] %s58
      %61 = dma.hbm_to_vmem [thread:$0]  %s4, 32, %s59, [#allocation9]
    $region21: #{tpu_custom_call.1} parent=1 // pred_fallthru
      _
    // Predicated region
    $region22: #{tpu_custom_call.1} parent=1 // pred_check
      _
    $region23: #{tpu_custom_call.1} parent=1 // pred_check_branch
      %63 = sbr.rel (0) target = $region25
    $region24: #{tpu_custom_call.1} parent=1 // pred_region
      _
    $region25: #{tpu_custom_call.1} parent=1 // pred_fallthru
      _
    // Predicated region
    $region26: #{tpu_custom_call.1} parent=1 // pred_check
      _
    $region27: #{tpu_custom_call.1} parent=1 // pred_check_branch
      %65 = sbr.rel (0) target = $region29
    $region28: #{tpu_custom_call.1} parent=1 // pred_region
      _
    $region29: #{tpu_custom_call.1} parent=1 // pred_fallthru
      _
    // Predicated region
    $region30: #{tpu_custom_call.1} parent=1 // pred_check
      _
    $region31: #{tpu_custom_call.1} parent=1 // pred_check_branch
      %67 = sbr.rel (0) target = $region33
    $region32: #{tpu_custom_call.1} parent=1 // pred_region
      %68 = dma.done [#allocation3], 128
    $region33: #{tpu_custom_call.1} parent=1 // pred_fallthru
      _
    // Predicated region
    $region34: #{tpu_custom_call.1} parent=1 // pred_check
      _
    $region35: #{tpu_custom_call.1} parent=1 // pred_check_branch
      %70 = sbr.rel (0) target = $region37
    $region36: #{tpu_custom_call.1} parent=1 // pred_region
      %71 = dma.done [#allocation6], 1024
    $region37: #{tpu_custom_call.1} parent=1 // pred_fallthru
      _
    // Predicated region
    $region38: #{tpu_custom_call.1} parent=1 // pred_check
      _
    $region39: #{tpu_custom_call.1} parent=1 // pred_check_branch
      %73 = sbr.rel (0) target = $region41
    $region40: #{tpu_custom_call.1} parent=1 // pred_region
      %74 = dma.done [#allocation6], 2048
    $region41: #{tpu_custom_call.1} parent=1 // pred_fallthru
      _
    // Predicated region
    $region42: #{tpu_custom_call.1} parent=1 // pred_check
      _
    $region43: #{tpu_custom_call.1} parent=1 // pred_check_branch
      %76 = sbr.rel (0) target = $region45
    $region44: #{tpu_custom_call.1} parent=1 // pred_region
      %77 = dma.done [#allocation9], 32
    $region45: #{tpu_custom_call.1} parent=1 // pred_fallthru
      _
    %v78 = vld [vmem:[#allocation2] sm:$0xff]
    %v79 = vld [vmem:[#allocation5] sm:$0xff]
    %v80 = vld [vmem:[#allocation5 + $0x8] sm:$0xff]
    %v81 = vld [vmem:[#allocation5 + $0x10] sm:$0xff]
    %v82 = vld [vmem:[#allocation5 + $0x18] sm:$0xff]
    %v83 = vld [vmem:[#allocation5 + $0x20] sm:$0xff]
    %v84 = vld [vmem:[#allocation5 + $0x28] sm:$0xff]
    %v85 = vld [vmem:[#allocation5 + $0x30] sm:$0xff]
    %v86 = vld [vmem:[#allocation5 + $0x38] sm:$0xff]
    %v87 = vld [vmem:[%s2] sm:$0x3]
    %v89 = vlaneseq
    %v90 = vshrl.u32 %v89, 7
    %v91 = vsub.s32 0, %v90
    %v92 = vrot.slane %v87, %v91
    %v93 = vlaneseq
    %v94 = vshrl.u32 %v93, 7
    %v95 = vsub.s32 1, %v94
    %v96 = vrot.slane %v87, %v95
    %vm99 = vcmask 261120
    %v101 = vsel %vm99, %v78, 0
    %103 = vmatprep.subr.mxu0 0.0
    %104 = vmatpush1.msra.mxu0 0.0
    %105 = vmatprep.subr.mxu0 0.0
    %106 = vmatpush1.msra.mxu0 0.0
    %107 = vmatprep.subr.mxu0 0.0
    %108 = vmatpush1.msra.mxu0 0.0
    %109 = vmatprep.subr.mxu0 0.0
    %110 = vmatpush1.msra.mxu0 0.0
    %111 = vmatprep.subr.mxu0 0.0
    %112 = vmatpush1.msra.mxu0 0.0
    %113 = vmatprep.subr.mxu0 0.0
    %114 = vmatpush1.msra.mxu0 0.0
    %115 = vmatprep.subr.mxu0 0.0
    %116 = vmatpush1.msra.mxu0 0.0
    %117 = vmatprep.subr.mxu0 0.0
    %118 = vmatpush1.msra.mxu0 0.0
    %119 = vmatprep.subr.mxu0 0.0
    %120 = vmatpush1.msra.mxu0 0.0
    %121 = vmatprep.subr.mxu0 0.0
    %122 = vmatpush1.msra.mxu0 0.0
    %123 = vmatprep.subr.mxu0 0.0
    %124 = vmatpush1.msra.mxu0 0.0
    %125 = vmatprep.subr.mxu0 0.0
    %126 = vmatpush1.msra.mxu0 0.0
    %127 = vmatprep.subr.mxu0 %v86
    %128 = vmatpush1.msra.mxu0 %v85
    %129 = vmatprep.subr.mxu0 %v84
    %130 = vmatpush1.msra.mxu0 %v83
    %131 = vmatprep.subr.mxu0 %v82
    %132 = vmatpush1.msra.mxu0 %v81
    %133 = vmatprep.subr.mxu0 %v80
    %134 = vmatpush1.msra.mxu0 %v79
    %135 = vmatprep.subr.mxu0 0.0
    %136 = vmatpush2.msra.mxu0 0.0
    %137 = vmatprep.subr.mxu0 0.0
    %138 = vmatpush2.msra.mxu0 0.0
    %139 = vmatprep.subr.mxu0 0.0
    %140 = vmatpush2.msra.mxu0 0.0
    %141 = vmatprep.subr.mxu0 0.0
    %142 = vmatpush2.msra.mxu0 0.0
    %143 = vmatprep.subr.mxu0 0.0
    %144 = vmatpush2.msra.mxu0 0.0
    %145 = vmatprep.subr.mxu0 0.0
    %146 = vmatpush2.msra.mxu0 0.0
    %147 = vmatprep.subr.mxu0 0.0
    %148 = vmatpush2.msra.mxu0 0.0
    %149 = vmatprep.subr.mxu0 0.0
    %150 = vmatpush2.msra.mxu0 0.0
    %151 = vmatprep.subr.mxu0 0.0
    %152 = vmatpush2.msra.mxu0 0.0
    %153 = vmatprep.subr.mxu0 0.0
    %154 = vmatpush2.msra.mxu0 0.0
    %155 = vmatprep.subr.mxu0 0.0
    %156 = vmatpush2.msra.mxu0 0.0
    %157 = vmatprep.subr.mxu0 0.0
    %158 = vmatpush2.msra.mxu0 0.0
    %159 = vmatprep.subr.mxu0 0.0
    %160 = vmatpush2.msra.mxu0 0.0
    %161 = vmatprep.subr.mxu0 0.0
    %162 = vmatpush2.msra.mxu0 0.0
    %163 = vmatprep.subr.mxu0 0.0
    %164 = vmatpush2.msra.mxu0 0.0
    %165 = vmatprep.subr.mxu0 0.0
    %166 = vmatpush2.msra.mxu0 0.0
    %167 = vmatprep.mubr.f32.mxu0 0.0
    %168 = vmatmul.mubr.f32.gmra.mxu0 %v101
    %v169 = vpop.f32.mrf.mxu0
    %v170 = vadd.f32 %v92, %v169
    %v171 = vpop.f32.mrf.mxu0
    %v172 = vadd.f32 %v96, %v171
    %173 = vdwg.mxu0
    %v174 = vld [vmem:[#allocation8] sm:$0x3]
    %v175 = vlaneseq
    %v176 = vshrl.u32 %v175, 7
    %v177 = vsub.s32 1, %v176
    %v178 = vrot.slane %v174, %v177
    %v179 = vsub.f32 %v172, %v178
    %v180 = vlaneseq
    %v181 = vshrl.u32 %v180, 7
    %v182 = vsub.s32 0, %v181
    %v183 = vrot.slane %v174, %v182
    %v184 = vmul.f32 %v179, %v183
    %vm185 = vcmp.ge.f32.partialorder %v184, 0.0
    %vm186 = vcmp.lt.f32.partialorder %v184, 0.5
    %vm187 = vmand %vm185, %vm186
    %v188 = vsel %vm187, 1, 0
    %v189 = vcvt.s32.f32 %v188
    %v190 = vmul.f32 %v189, 0.8413448
    %vm191 = vcmp.ge.f32.partialorder %v184, 0.5
    %vm192 = vcmp.lt.f32.partialorder %v184, 1.0
    %vm193 = vmand %vm191, %vm192
    %v194 = vsel %vm193, 1, 0
    %v195 = vcvt.s32.f32 %v194
    %v196 = vmul.f32 %v195, -0.15865526
    %v197 = vadd.f32 %v190, %v196
    %v198 = vld [vmem:[#allocation7] sm:$0xff]
    %v199 = vld [vmem:[#allocation7 + $0x8] sm:$0xff]
    %v200 = vld [vmem:[#allocation7 + $0x10] sm:$0xff]
    %v201 = vld [vmem:[#allocation7 + $0x18] sm:$0xff]
    %v202 = vld [vmem:[#allocation7 + $0x20] sm:$0xff]
    %v203 = vld [vmem:[#allocation7 + $0x28] sm:$0xff]
    %v204 = vld [vmem:[#allocation7 + $0x30] sm:$0xff]
    %v205 = vld [vmem:[#allocation7 + $0x38] sm:$0xff]
    %v206 = vld [vmem:[#allocation7 + $0x40] sm:$0xff]
    %v207 = vld [vmem:[#allocation7 + $0x48] sm:$0xff]
    %v208 = vld [vmem:[#allocation7 + $0x50] sm:$0xff]
    %v209 = vld [vmem:[#allocation7 + $0x58] sm:$0xff]
    %v210 = vld [vmem:[#allocation7 + $0x60] sm:$0xff]
    %v211 = vld [vmem:[#allocation7 + $0x68] sm:$0xff]
    %v212 = vld [vmem:[#allocation7 + $0x70] sm:$0xff]
    %v213 = vld [vmem:[#allocation7 + $0x78] sm:$0xff]
    %214 = vmatprep.subr.mxu0 0.0
    %215 = vmatpush1.msra.mxu0 %v213
    %216 = vmatprep.subr.mxu0 0.0
    %217 = vmatpush1.msra.mxu0 %v212
    %218 = vmatprep.subr.mxu0 0.0
    %219 = vmatpush1.msra.mxu0 %v211
    %220 = vmatprep.subr.mxu0 0.0
    %221 = vmatpush1.msra.mxu0 %v210
    %222 = vmatprep.subr.mxu0 0.0
    %223 = vmatpush1.msra.mxu0 %v209
    %224 = vmatprep.subr.mxu0 0.0
    %225 = vmatpush1.msra.mxu0 %v208
    %226 = vmatprep.subr.mxu0 0.0
    %227 = vmatpush1.msra.mxu0 %v207
    %228 = vmatprep.subr.mxu0 0.0
    %229 = vmatpush1.msra.mxu0 %v206
    %230 = vmatprep.subr.mxu0 0.0
    %231 = vmatpush1.msra.mxu0 %v205
    %232 = vmatprep.subr.mxu0 0.0
    %233 = vmatpush1.msra.mxu0 %v204
    %234 = vmatprep.subr.mxu0 0.0
    %235 = vmatpush1.msra.mxu0 %v203
    %236 = vmatprep.subr.mxu0 0.0
    %237 = vmatpush1.msra.mxu0 %v202
    %238 = vmatprep.subr.mxu0 0.0
    %239 = vmatpush1.msra.mxu0 %v201
    %240 = vmatprep.subr.mxu0 0.0
    %241 = vmatpush1.msra.mxu0 %v200
    %242 = vmatprep.subr.mxu0 0.0
    %243 = vmatpush1.msra.mxu0 %v199
    %244 = vmatprep.subr.mxu0 0.0
    %245 = vmatpush1.msra.mxu0 %v198
    %246 = vmatprep.subr.mxu0 0.0
    %247 = vmatpush2.msra.mxu0 0.0
    %248 = vmatprep.subr.mxu0 0.0
    %249 = vmatpush2.msra.mxu0 0.0
    %250 = vmatprep.subr.mxu0 0.0
    %251 = vmatpush2.msra.mxu0 0.0
    %252 = vmatprep.subr.mxu0 0.0
    %253 = vmatpush2.msra.mxu0 0.0
    %254 = vmatprep.subr.mxu0 0.0
    %255 = vmatpush2.msra.mxu0 0.0
    %256 = vmatprep.subr.mxu0 0.0
    %257 = vmatpush2.msra.mxu0 0.0
    %258 = vmatprep.subr.mxu0 0.0
    %259 = vmatpush2.msra.mxu0 0.0
    %260 = vmatprep.subr.mxu0 0.0
    %261 = vmatpush2.msra.mxu0 0.0
    %262 = vmatprep.subr.mxu0 0.0
    %263 = vmatpush2.msra.mxu0 0.0
    %264 = vmatprep.subr.mxu0 0.0
    %265 = vmatpush2.msra.mxu0 0.0
    %266 = vmatprep.subr.mxu0 0.0
    %267 = vmatpush2.msra.mxu0 0.0
    %268 = vmatprep.subr.mxu0 0.0
    %269 = vmatpush2.msra.mxu0 0.0
    %270 = vmatprep.subr.mxu0 0.0
    %271 = vmatpush2.msra.mxu0 0.0
    %272 = vmatprep.subr.mxu0 0.0
    %273 = vmatpush2.msra.mxu0 0.0
    %274 = vmatprep.subr.mxu0 0.0
    %275 = vmatpush2.msra.mxu0 0.0
    %276 = vmatprep.subr.mxu0 0.0
    %277 = vmatpush2.msra.mxu0 0.0
    %278 = vmatprep.mubr.f32.mxu0 0.0
    %279 = vmatmul.mubr.f32.gmra.mxu0 %v197
    %v280 = vpop.f32.mrf.mxu0
    %v281 = vadd.f32 0.0, %v280
    %v282 = vpop.f32.mrf.mxu0
    %283 = vdwg.mxu0
    %v284 = vadd.f32 %v170, %v281
    %v285 = vld [vmem:[%s5] sm:$0x1]
    %v287 = vlaneseq
    %v288 = vshrl.u32 %v287, 7
    %v289 = vsub.s32 0, %v288
    %v290 = vrot.slane %v285, %v289
    %v292 = vadd.f32 %v284, %v290
    %v293 = vld [vmem:[%s6] sm:$0x7]
    %294 = vadd.xlane.f32.xlu0 %v292
    %v295 = vpop.xlane.xlu0 %294
    %v296 = vmul.f32 %v295, 0.03125
    %v297 = vsub.f32 %v292, %v296
    %v298 = vlaneseq
    %v299 = vshrl.u32 %v298, 7
    %v300 = vsub.s32 2, %v299
    %v301 = vrot.slane %v293, %v300
    %v302 = vmul.f32 %v297, %v301
    %v303 = vmul.f32 %v302, %v302
    %304 = vadd.xlane.f32.xlu0 %v303
    %v305 = vpop.xlane.xlu0 %304
    %v306 = vmul.f32 %v305, 0.03125
    %v307 = vadd.f32 %v306, 1e-05
    %v308 = vrsqrt.pop %v307
    %v309 = vmul.f32 %v302, %v308
    %v310 = vlaneseq
    %v311 = vshrl.u32 %v310, 7
    %v312 = vsub.s32 0, %v311
    %v313 = vrot.slane %v293, %v312
    %v314 = vmul.f32 %v309, %v313
    %v315 = vlaneseq
    %v316 = vshrl.u32 %v315, 7
    %v317 = vsub.s32 1, %v316
    %v318 = vrot.slane %v293, %v317
    %v319 = vadd.f32 %v314, %v318
    %320 = vst [vmem:[#allocation10] sm:$0xff] %v319
    // Predicated region
    $region46: #{tpu_custom_call.1} parent=1 // pred_check
      _
    $region47: #{tpu_custom_call.1} parent=1 // pred_check_branch
      %322 = sbr.rel (0) target = $region49
    $region48: #{tpu_custom_call.1} parent=1 // pred_region
      %s324 = ssub.s32 128, 128
      %325 = vsyncadd [#allocation4], %s324
      %s327 = sshll.u32 [#allocation10], 4
      %s328 = int_to_ptr.vmem [resolvable:$true] %s327
      %330 = dma.vmem_to_hbm [thread:$0]  %s328, 128, %s7, [#allocation4]
    $region49: #{tpu_custom_call.1} parent=1 // pred_fallthru
      _
    // Predicated region
    $region50: #{tpu_custom_call.1} parent=1 // pred_check
      _
    $region51: #{tpu_custom_call.1} parent=1 // pred_check_branch
      %332 = sbr.rel (0) target = $region53
    $region52: #{tpu_custom_call.1} parent=1 // pred_region
      %333 = dma.done [#allocation4], 128
    $region53: #{tpu_custom_call.1} parent=1 // pred_fallthru
      _
    %334 = vsyncpa [#allocation3], 1
    %335 = vsyncpa [#allocation6], 1
    %336 = vsyncpa [#allocation9], 1
    %337 = vsyncpa [#allocation4], 1

</llo_original>
